<compile_context>
chip_gen: v5e
topology: v5e:2x2
jax: 0.10.0
libtpu: 0.0.40
codegen_flags: <defaults>
</compile_context>

<pallas_src>
import functools

import jax
import jax.numpy as jnp
from jax.experimental import pallas as pl
from jax.experimental.pallas import tpu as pltpu


_VMEM_BUDGET = 24 * 1024 * 1024   # v7x-safe (64 MiB physical, 32 MiB scoped default)


def _round_up(x, m):
    return ((x + m - 1) // m) * m


def _vmem_bytes(tile_n, F, tile_o):
    # f32 bytes: double-buffered x tile + output tile, plus (conservatively
    # double-buffered) centres^T / ||c||^2 / -sigma^2 tiles.
    return 4 * (2 * tile_n * F + 2 * tile_n * tile_o + 2 * (F * tile_o + 2 * tile_o))


def _pick_tile_n(N, F, tile_o, o_blocks, tile_n):
    tile = min(tile_n, _round_up(N, 8))
    # Shrink until the per-step buffers fit the (v7x-safe) VMEM budget.
    while tile > 8 and _vmem_bytes(tile, F, tile_o) > _VMEM_BUDGET:
        tile = max(8, _round_up(tile // 2, 8))
    # Megacore (v7x: 2 TensorCores): make sure a 2nd parallel block exists
    # whenever N allows it.
    if N > 8 and pl.cdiv(N, tile) * o_blocks < 2:
        tile = max(8, _round_up(pl.cdiv(N, 2), 8))
    return tile


def _rbf_kernel(x_ref, ct_ref, c2_ref, ns2_ref, o_ref):
    # x_ref  : (tile_n, F)      input rows
    # ct_ref : (F, tile_o)      -2 * centres^T  (lane-dense MXU RHS, -2 folded in)
    # c2_ref : (1, tile_o)      ||c||^2 per centre
    # ns2_ref: (1, tile_o)      -(sigmas^2)
    # o_ref  : (tile_n, tile_o)
    x = x_ref[...]
    x2 = jnp.sum(x * x, axis=-1, keepdims=True)                  # (tile_n, 1)
    cross = jnp.dot(x, ct_ref[...],
                    preferred_element_type=jnp.float32)          # = -2 * x . c
    dist = x2 + c2_ref[...] + cross                              # ||x - c||^2
    o_ref[...] = jnp.exp((dist * dist) * ns2_ref[...])           # exp(-(dist*sigma)^2)


@functools.partial(jax.jit, static_argnames=("tile_n", "tile_o"))
def rbf_layer(inp, centres, sigmas, *, tile_n=1024, tile_o=2048):
    """inp: (1, N, F) float32; centres: (O, F); sigmas: (O,). Returns (1, N, O)."""
    x = inp[0].astype(jnp.float32)                   # (N, F)
    N, F = x.shape
    O = centres.shape[0]

    # ---- grid-invariant prep (hoisted out of the kernel) ----
    o_pad = _round_up(O, 128)                        # lane-dense output stores
    ct = -2.0 * centres.T.astype(jnp.float32)        # (F, O), -2 folded in
    c2 = jnp.sum(centres.astype(jnp.float32) ** 2, axis=-1)      # (O,)
    ns2 = -(sigmas.astype(jnp.float32) ** 2)                      # (O,)
    if o_pad != O:
        ct = jnp.pad(ct, ((0, 0), (0, o_pad - O)))
        c2 = jnp.pad(c2, (0, o_pad - O))
        ns2 = jnp.pad(ns2, (0, o_pad - O))
    c2 = c2.reshape(1, o_pad)
    ns2 = ns2.reshape(1, o_pad)

    # ---- tiling ----
    t_o = min(_round_up(tile_o, 128), o_pad)
    o_blocks = pl.cdiv(o_pad, t_o)
    t_n = _pick_tile_n(N, F, t_o, o_blocks, tile_n)
    n_blocks = pl.cdiv(N, t_n)

    vmem_limit = min(32 << 20, max(16 << 20, _vmem_bytes(t_n, F, t_o) + (8 << 20)))

    out = pl.pallas_call(
        _rbf_kernel,
        out_shape=jax.ShapeDtypeStruct((N, o_pad), jnp.float32),
        grid_spec=pltpu.PrefetchScalarGridSpec(
            num_scalar_prefetch=0,
            grid=(n_blocks, o_blocks),
            in_specs=[
                pl.BlockSpec((t_n, F), lambda i, j: (i, 0)),   # x row tile
                pl.BlockSpec((F, t_o), lambda i, j: (0, j)),   # -2 * centres^T
                pl.BlockSpec((1, t_o), lambda i, j: (0, j)),   # ||c||^2
                pl.BlockSpec((1, t_o), lambda i, j: (0, j)),   # -(sigmas^2)
            ],
            out_specs=pl.BlockSpec((t_n, t_o), lambda i, j: (i, j)),
        ),
        compiler_params=pltpu.CompilerParams(
            dimension_semantics=("parallel", "parallel"),
            vmem_limit_bytes=vmem_limit),
    )(x, ct, c2, ns2)

    if o_pad != O:
        out = out[:, :O]
    return out[None, ...]                            # (1, N, O)


def rbf_layer_ref(inp, centres, sigmas):
    """Pure-JAX reference mirroring the PyTorch broadcast formulation."""
    x = inp[0]                                        # (N, F)
    diff = x[:, None, :] - centres[None, :, :]        # (N, O, F)
    dist = jnp.sum(diff * diff, axis=-1) * sigmas[None, :]
    return jnp.exp(-(dist ** 2))[None, ...]


if __name__ == "__main__":
    key = jax.random.PRNGKey(0)

    # Case 1: module-consistent small shapes, aligned dims.
    N, in_features, out_features = 16, 32, 128
    k_in, k_c, key = jax.random.split(key, 3)
    centres = jax.random.uniform(k_c, (out_features, in_features),
                                 minval=-1.0, maxval=1.0, dtype=jnp.float32)
    sigmas = jnp.full((out_features,), 10.0, dtype=jnp.float32)
    inp = jax.random.normal(k_in, (1, N, in_features), dtype=jnp.float32)

    out = jax.block_until_ready(rbf_layer(inp, centres, sigmas))
    ref = rbf_layer_ref(inp, centres, sigmas)
    assert out.shape == (1, N, out_features)
    assert jnp.allclose(out, ref, atol=1e-4, rtol=1e-4), "mismatch vs reference (case 1)"

    # Case 2: unaligned N and out_features -> exercises the masked ragged N
    # block (no wrapper-side padding anymore) and the O-padding path.
    N2, in2, out2 = 10, 24, 96
    k_in2, k_c2 = jax.random.split(key)
    centres2 = jax.random.uniform(k_c2, (out2, in2),
                                  minval=-1.0, maxval=1.0, dtype=jnp.float32)
    sigmas2 = jnp.full((out2,), 10.0, dtype=jnp.float32)
    inp2 = jax.random.normal(k_in2, (1, N2, in2), dtype=jnp.float32)

    out_2 = jax.block_until_ready(rbf_layer(inp2, centres2, sigmas2))
    ref_2 = rbf_layer_ref(inp2, centres2, sigmas2)
    assert out_2.shape == (1, N2, out2)
    assert jnp.allclose(out_2, ref_2, atol=1e-4, rtol=1e-4), "mismatch vs reference (case 2)"

    print("KERNEL_OK")
</pallas_src>

<mosaic_0001>
module attributes {stable_mosaic.version = 11 : i64} {
  func.func @_rbf_kernel(%arg0: i32, %arg1: i32, %arg2: memref<8x32xf32, #tpu.memory_space<vmem>>, %arg3: memref<32x128xf32, #tpu.memory_space<vmem>>, %arg4: memref<1x128xf32, #tpu.memory_space<vmem>>, %arg5: memref<1x128xf32, #tpu.memory_space<vmem>>, %arg6: memref<8x128xf32, #tpu.memory_space<vmem>>) attributes {dimension_semantics = [#tpu.dimension_semantics<parallel>, #tpu.dimension_semantics<parallel>], iteration_bounds = array<i64: 2, 1>, scalar_prefetch = 0 : i64, scratch_operands = 0 : i64, tpu.core_type = #tpu.core_type<tc>, window_params = [{transform_indices = @transform_0, window_bounds = array<i64: 8, 32>}, {transform_indices = @transform_1, window_bounds = array<i64: 32, 128>}, {transform_indices = @transform_2, window_bounds = array<i64: 1, 128>}, {transform_indices = @transform_3, window_bounds = array<i64: 1, 128>}, {transform_indices = @transform_4, window_bounds = array<i64: 8, 128>}]} {
    %c0 = arith.constant 0 : index
    %c0_0 = arith.constant 0 : index
    %0 = vector.load %arg2[%c0, %c0_0] : memref<8x32xf32, #tpu.memory_space<vmem>>, vector<8x32xf32>
    %1 = arith.mulf %0, %0 : vector<8x32xf32>
    %cst = arith.constant dense<0.000000e+00> : vector<8xf32>
    %2 = vector.multi_reduction <add>, %1, %cst [1] : vector<8x32xf32> to vector<8xf32>
    %3 = vector.shape_cast %2 : vector<8xf32> to vector<8x1xf32>
    %c0_1 = arith.constant 0 : index
    %c0_2 = arith.constant 0 : index
    %4 = vector.load %arg3[%c0_1, %c0_2] : memref<32x128xf32, #tpu.memory_space<vmem>>, vector<32x128xf32>
    %cst_3 = arith.constant dense<0.000000e+00> : vector<8x128xf32>
    %5 = tpu.matmul %0, %4, %cst_3 {dimension_numbers = #tpu.dot_dimension_numbers<[1], [0], [0], [1], [0, 0, 1, 1], [], []>} : vector<8x32xf32>, vector<32x128xf32>, vector<8x128xf32> -> vector<8x128xf32>
    %c0_4 = arith.constant 0 : index
    %c0_5 = arith.constant 0 : index
    %6 = vector.load %arg4[%c0_4, %c0_5] : memref<1x128xf32, #tpu.memory_space<vmem>>, vector<1x128xf32>
    %7 = vector.broadcast %3 : vector<8x1xf32> to vector<8x128xf32>
    %8 = vector.broadcast %6 : vector<1x128xf32> to vector<8x128xf32>
    %9 = arith.addf %7, %8 : vector<8x128xf32>
    %10 = arith.addf %9, %5 : vector<8x128xf32>
    %11 = arith.mulf %10, %10 : vector<8x128xf32>
    %c0_6 = arith.constant 0 : index
    %c0_7 = arith.constant 0 : index
    %12 = vector.load %arg5[%c0_6, %c0_7] : memref<1x128xf32, #tpu.memory_space<vmem>>, vector<1x128xf32>
    %13 = vector.broadcast %12 : vector<1x128xf32> to vector<8x128xf32>
    %14 = arith.mulf %11, %13 : vector<8x128xf32>
    %15 = math.exp %14 : vector<8x128xf32>
    %c0_8 = arith.constant 0 : index
    %c0_9 = arith.constant 0 : index
    %16 = vector.load %arg6[%c0_8, %c0_9] : memref<8x128xf32, #tpu.memory_space<vmem>>, vector<8x128xf32>
    tpu.vector_store %arg6[%c0_8, %c0_9], %15 {strides = array<i32>} : memref<8x128xf32, #tpu.memory_space<vmem>>, vector<8x128xf32>,
    return
  }
  func.func @transform_0(%arg0: i32, %arg1: i32) -> (i32, i32) {
    %c0_i32 = arith.constant 0 : i32
    %c0_i32_0 = arith.constant 0 : i32
    return %arg0, %c0_i32 : i32, i32
  }
  func.func @transform_1(%arg0: i32, %arg1: i32) -> (i32, i32) {
    %c0_i32 = arith.constant 0 : i32
    %c0_i32_0 = arith.constant 0 : i32
    return %c0_i32, %arg1 : i32, i32
  }
  func.func @transform_2(%arg0: i32, %arg1: i32) -> (i32, i32) {
    %c0_i32 = arith.constant 0 : i32
    %c0_i32_0 = arith.constant 0 : i32
    return %c0_i32, %arg1 : i32, i32
  }
  func.func @transform_3(%arg0: i32, %arg1: i32) -> (i32, i32) {
    %c0_i32 = arith.constant 0 : i32
    %c0_i32_0 = arith.constant 0 : i32
    return %c0_i32, %arg1 : i32, i32
  }
  func.func @transform_4(%arg0: i32, %arg1: i32) -> (i32, i32) {
    %c0_i32 = arith.constant 0 : i32
    return %arg0, %arg1 : i32, i32
  }
}

</mosaic_0001>

<llo_original>
// kernel: rbf_layer.1
$region0: #{rbf_layer.1}
  #allocation0 [shape = 'u32[]', space=smem, size = 0x4, offset = 0x4, fixed_abs, tag = 'smem constant byte address 0x4 - core index']
  #allocation1 [shape = 'u32[72,128]{1,0:T(1,128)}', space=vmem, size = 0x9000, scoped, tag = 'internal scratch']
  %s0 = inlined_call_operand.vmem [shape: f32[16,32], index: 0, kind: input, shape index: {}]
  %s1 = inlined_call_operand.vmem [shape: f32[32,128], index: 1, kind: input, shape index: {}]
  %s2 = inlined_call_operand.vmem [shape: f32[1,128], index: 2, kind: input, shape index: {}]
  %s3 = inlined_call_operand.vmem [shape: f32[1,128], index: 3, kind: input, shape index: {}]
  %s4 = inlined_call_operand.hbm [shape: f32[16,128], index: 4, kind: output, shape index: {}]
  %s5 = sld [smem:[#allocation0]]
  $region49: #{rbf_layer.1} parent=0
    _
  %s7 = ssub.s32 1, %s5
  %s8 = scalar_select 0, %s7, %s5
  $region1: #{rbf_layer.1} parent=0
    #allocation2 [shape = 'u8[8192]{0}', space=vmem, size = 0x2000, scoped, tag = 'output window, operand 0']
    #allocation3 [shape = 's32[2]{0}', space=sflag, size = 0x8, scoped, tag = 'scoped memory for rbf_layer.1']
    %9 = vsyncpa [#allocation3], 0
    %s10 = scalar_lea.sflag [#allocation3], 1
    %11 = vsyncpa %s10, 0
    loop: start=0, step=1, limit=4
    $region2: #{rbf_layer.1} parent=1 // loop_pre_header
      _
    $region3: #{rbf_layer.1} parent=1 // loop_header
      %s13 = sphi 0, %s17
      %p14 = scmp.ge.s32.totalorder %s13, 4
      %s20 = sphi 0, %s32
      %s21 = sphi 0, %s28
      %s22 = sphi 0, %s20
      %s23 = sphi 0, %s21
      %s24 = sphi 0, %s22
      %s25 = sphi 0, %s23
      %s35 = sphi 0, %s37
      %s38 = sphi 0, %s35
      %s39 = sphi 0, %s38
      %s55 = sphi 0, %s39
      %s61 = sphi 0, %s63
      %s64 = sphi 0, %s61
      %s65 = sphi 0, %s64
      %s81 = sphi 0, %s65
      %s87 = sphi 0, %s89
      %s90 = sphi 0, %s87
      %s91 = sphi 0, %s90
      %s107 = sphi 0, %s91
      %s113 = sphi 0, %s115
      %s116 = sphi 0, %s113
      %s117 = sphi 0, %s116
      %s133 = sphi 0, %s117
      %s141 = sphi 0, %s143
      %s144 = sphi 0, %s141
      %s145 = sphi 0, %s144
      %s161 = sphi 0, %s145
    $region4: #{rbf_layer.1} parent=1 // loop_header_branch
      %16 = sbr.rel (%p14) target = $region8
    $region5: #{rbf_layer.1} parent=1 // loop_body
      %s18 = ssub.s32 %s13, 1
      %s19 = ssub.s32 %s13, 2
      %s26 = sadd.s32 1, %s21
      %p27 = scmp.ge.s32.totalorder %s26, 1
      %s28 = scalar_select %p27, 0, %s26
      %s29 = sadd.s32 1, %s20
      %s30 = scalar_select %p27, %s29, %s20
      %p31 = scmp.ge.s32.totalorder %s30, 2
      %s32 = scalar_select %p31, 0, %s30
      %s33 = ssub.s32 %s20, %s32
      %p34 = scmp.eq.s32.totalorder %s33, 0
      %s36 = sadd.s32 %s35, 1
      %s37 = scalar_select %p34, %s35, %s36
      %p40 = pneg %p34
      %p41 = scmp.eq.s32.totalorder %s13, 1
      %p42 = por %p40, %p41
      %p43 = scmp.ne.s32.totalorder %s35, %s38
      %p44 = scmp.eq.s32.totalorder %s13, 0
      %p45 = por %p43, %p44
      %p46 = scmp.ne.s32.totalorder %s35, %s38
      %p47 = scmp.eq.s32.totalorder %s18, 1
      %p48 = por %p46, %p47
      %p49 = scmp.ne.s32.totalorder %s38, %s39
      %p50 = scmp.eq.s32.totalorder %s18, 0
      %p51 = por %p49, %p50
      %p52 = scmp.ne.s32.totalorder %s38, %s39
      %p53 = scmp.eq.s32.totalorder %s19, 1
      %p54 = por %p52, %p53
      %p56 = scmp.ne.s32.totalorder %s39, %s55
      %p57 = scmp.eq.s32.totalorder %s19, 0
      %p58 = por %p56, %p57
      %s59 = ssub.s32 %s21, %s28
      %p60 = scmp.eq.s32.totalorder %s59, 0
      %s62 = sadd.s32 %s61, 1
      %s63 = scalar_select %p60, %s61, %s62
      %p66 = pneg %p60
      %p67 = scmp.eq.s32.totalorder %s13, 1
      %p68 = por %p66, %p67
      %p69 = scmp.ne.s32.totalorder %s61, %s64
      %p70 = scmp.eq.s32.totalorder %s13, 0
      %p71 = por %p69, %p70
      %p72 = scmp.ne.s32.totalorder %s61, %s64
      %p73 = scmp.eq.s32.totalorder %s18, 1
      %p74 = por %p72, %p73
      %p75 = scmp.ne.s32.totalorder %s64, %s65
      %p76 = scmp.eq.s32.totalorder %s18, 0
      %p77 = por %p75, %p76
      %p78 = scmp.ne.s32.totalorder %s64, %s65
      %p79 = scmp.eq.s32.totalorder %s19, 1
      %p80 = por %p78, %p79
      %p82 = scmp.ne.s32.totalorder %s65, %s81
      %p83 = scmp.eq.s32.totalorder %s19, 0
      %p84 = por %p82, %p83
      %s85 = ssub.s32 %s21, %s28
      %p86 = scmp.eq.s32.totalorder %s85, 0
      %s88 = sadd.s32 %s87, 1
      %s89 = scalar_select %p86, %s87, %s88
      %p92 = pneg %p86
      %p93 = scmp.eq.s32.totalorder %s13, 1
      %p94 = por %p92, %p93
      %p95 = scmp.ne.s32.totalorder %s87, %s90
      %p96 = scmp.eq.s32.totalorder %s13, 0
      %p97 = por %p95, %p96
      %p98 = scmp.ne.s32.totalorder %s87, %s90
      %p99 = scmp.eq.s32.totalorder %s18, 1
      %p100 = por %p98, %p99
      %p101 = scmp.ne.s32.totalorder %s90, %s91
      %p102 = scmp.eq.s32.totalorder %s18, 0
      %p103 = por %p101, %p102
      %p104 = scmp.ne.s32.totalorder %s90, %s91
      %p105 = scmp.eq.s32.totalorder %s19, 1
      %p106 = por %p104, %p105
      %p108 = scmp.ne.s32.totalorder %s91, %s107
      %p109 = scmp.eq.s32.totalorder %s19, 0
      %p110 = por %p108, %p109
      %s111 = ssub.s32 %s21, %s28
      %p112 = scmp.eq.s32.totalorder %s111, 0
      %s114 = sadd.s32 %s113, 1
      %s115 = scalar_select %p112, %s113, %s114
      %p118 = pneg %p112
      %p119 = scmp.eq.s32.totalorder %s13, 1
      %p120 = por %p118, %p119
      %p121 = scmp.ne.s32.totalorder %s113, %s116
      %p122 = scmp.eq.s32.totalorder %s13, 0
      %p123 = por %p121, %p122
      %p124 = scmp.ne.s32.totalorder %s113, %s116
      %p125 = scmp.eq.s32.totalorder %s18, 1
      %p126 = por %p124, %p125
      %p127 = scmp.ne.s32.totalorder %s116, %s117
      %p128 = scmp.eq.s32.totalorder %s18, 0
      %p129 = por %p127, %p128
      %p130 = scmp.ne.s32.totalorder %s116, %s117
      %p131 = scmp.eq.s32.totalorder %s19, 1
      %p132 = por %p130, %p131
      %p134 = scmp.ne.s32.totalorder %s117, %s133
      %p135 = scmp.eq.s32.totalorder %s19, 0
      %p136 = por %p134, %p135
      %s137 = ssub.s32 %s20, %s32
      %s138 = ssub.s32 %s21, %s28
      %s139 = sor.u32 %s137, %s138
      %p140 = scmp.eq.s32.totalorder %s139, 0
      %s142 = sadd.s32 %s141, 1
      %s143 = scalar_select %p140, %s141, %s142
      %p146 = pneg %p140
      %p147 = scmp.eq.s32.totalorder %s13, 1
      %p148 = por %p146, %p147
      %p149 = scmp.ne.s32.totalorder %s141, %s144
      %p150 = scmp.eq.s32.totalorder %s13, 0
      %p151 = por %p149, %p150
      %p152 = scmp.ne.s32.totalorder %s141, %s144
      %p153 = scmp.eq.s32.totalorder %s18, 1
      %p154 = por %p152, %p153
      %p155 = scmp.ne.s32.totalorder %s144, %s145
      %p156 = scmp.eq.s32.totalorder %s18, 0
      %p157 = por %p155, %p156
      %p158 = scmp.ne.s32.totalorder %s144, %s145
      %p159 = scmp.eq.s32.totalorder %s19, 1
      %p160 = por %p158, %p159
      %p162 = scmp.ne.s32.totalorder %s145, %s161
      %p163 = scmp.eq.s32.totalorder %s19, 0
      %p164 = por %p162, %p163
      %p165 = scmp.le.s32.totalorder 1, %s13
      %p166 = scmp.lt.s32.totalorder %s13, 3
      %p167 = pnand %p165, %p166
      %p168 = pneg %p167
      // Predicated region
      $region9: #{rbf_layer.1} parent=5 // pred_check
        _
      $region10: #{rbf_layer.1} parent=5 // pred_check_branch
        %170 = sbr.rel (%p167) target = $region12
      $region11: #{rbf_layer.1} parent=5 // pred_region
        %s171 = ssub.s32 %s13, 1
        // Predicated region
        $region13: #{rbf_layer.1} parent=11 // pred_check
          %p172 = pneg %p77
        $region14: #{rbf_layer.1} parent=11 // pred_check_branch
          %174 = sbr.rel (%p172) target = $region16
        $region15: #{rbf_layer.1} parent=11 // pred_region
          %p175 = scmp.lt.s32.totalorder %s23, 0
          %s176 = scalar_select %p175, %s23, 0
          %s177 = smul.addr %s176, 8
          %s178 = scalar_lea.vmem %s1, %s177
        $region16: #{rbf_layer.1} parent=11 // pred_fallthru
          _
        // Predicated region
        $region17: #{rbf_layer.1} parent=11 // pred_check
          %p179 = pneg %p103
        $region18: #{rbf_layer.1} parent=11 // pred_check_branch
          %181 = sbr.rel (%p179) target = $region20
        $region19: #{rbf_layer.1} parent=11 // pred_region
          %p182 = scmp.lt.s32.totalorder %s23, 0
          %s183 = scalar_select %p182, %s23, 0
          %s184 = scalar_lea.vmem %s2, %s183
        $region20: #{rbf_layer.1} parent=11 // pred_fallthru
          _
        // Predicated region
        $region21: #{rbf_layer.1} parent=11 // pred_check
          %p185 = pneg %p129
        $region22: #{rbf_layer.1} parent=11 // pred_check_branch
          %187 = sbr.rel (%p185) target = $region24
        $region23: #{rbf_layer.1} parent=11 // pred_region
          %p188 = scmp.lt.s32.totalorder %s23, 0
          %s189 = scalar_select %p188, %s23, 0
          %s190 = scalar_lea.vmem %s3, %s189
        $region24: #{rbf_layer.1} parent=11 // pred_fallthru
          _
      $region12: #{rbf_layer.1} parent=5 // pred_fallthru
        _
      %p191 = scmp.lt.s32.totalorder %s13, 2
      // Predicated region
      $region25: #{rbf_layer.1} parent=5 // pred_check
        %p192 = pneg %p191
      $region26: #{rbf_layer.1} parent=5 // pred_check_branch
        %194 = sbr.rel (%p192) target = $region28
      $region27: #{rbf_layer.1} parent=5 // pred_region
        // Predicated region
        $region29: #{rbf_layer.1} parent=27 // pred_check
          %p195 = pneg %p45
        $region30: #{rbf_layer.1} parent=27 // pred_check_branch
          %197 = sbr.rel (%p195) target = $region32
        $region31: #{rbf_layer.1} parent=27 // pred_region
          %p198 = scmp.lt.s32.totalorder %s20, 1
          %s199 = scalar_select %p198, %s20, 1
          %s200 = smul.addr %s199, 8
          %s201 = scalar_lea.vmem %s0, %s200
        $region32: #{rbf_layer.1} parent=27 // pred_fallthru
          _
      $region28: #{rbf_layer.1} parent=5 // pred_fallthru
        _
      %p202 = scmp.le.s32.totalorder 1, %s13
      %p203 = scmp.lt.s32.totalorder %s13, 3
      %p204 = pnand %p202, %p203
      %p205 = pneg %p204
      // Predicated region
      $region33: #{rbf_layer.1} parent=5 // pred_check
        _
      $region34: #{rbf_layer.1} parent=5 // pred_check_branch
        %207 = sbr.rel (%p204) target = $region36
      $region35: #{rbf_layer.1} parent=5 // pred_region
        %s208 = ssub.s32 %s13, 1
        %p209 = scmp.lt.s32.totalorder %s22, 1
        %s210 = scalar_select %p209, %s22, 1
        %s211 = smul.addr %s210, 8
        %s212 = scalar_lea.vmem %s0, %s211
        %p213 = pneg %p51
        %p214 = pneg %p48
        %p215 = scmp.lt.s32.totalorder %s23, 0
        %s216 = scalar_select %p215, %s23, 0
        %s217 = smul.addr %s216, 8
        %s218 = scalar_lea.vmem %s1, %s217
        %p219 = pneg %p77
        %p220 = pneg %p74
        %p221 = scmp.lt.s32.totalorder %s23, 0
        %s222 = scalar_select %p221, %s23, 0
        %s223 = scalar_lea.vmem %s2, %s222
        %p224 = pneg %p103
        %p225 = pneg %p100
        %p226 = scmp.lt.s32.totalorder %s23, 0
        %s227 = scalar_select %p226, %s23, 0
        %s228 = scalar_lea.vmem %s3, %s227
        %p229 = pneg %p129
        %p230 = pneg %p126
        %p231 = pneg %p157
        %p232 = pneg %p154
        %s233 = sand.u32 %s144, 1
        %s234 = scalar_lea.sflag [#allocation3], %s233
        %s235 = sand.u32 %s144, 1
        %s236 = smul.addr %s235, 8
        %s237 = scalar_lea.vmem [#allocation2], %s236
        %p238 = scmp.lt.s32.totalorder %s22, 1
        %s239 = scalar_select %p238, %s22, 1
        %s240 = smul.addr %s239, 8
        %s241 = scalar_lea.vmem %s0, %s240
        %p242 = scmp.lt.s32.totalorder %s23, 0
        %s243 = scalar_select %p242, %s23, 0
        %s244 = smul.addr %s243, 8
        %s245 = scalar_lea.vmem %s1, %s244
        %p246 = scmp.lt.s32.totalorder %s23, 0
        %s247 = scalar_select %p246, %s23, 0
        %s248 = scalar_lea.vmem %s2, %s247
        %p249 = scmp.lt.s32.totalorder %s23, 0
        %s250 = scalar_select %p249, %s23, 0
        %s251 = scalar_lea.vmem %s3, %s250
        %v252 = vld [vmem:[%s241] sm:$0xff]
        %v253 = vmul.f32 %v252, %v252
        %vm254 = vcmask 261120
        %v255 = vsel %vm254, %v253, 0.0
        %256 = vadd.xlane.f32.xlu0 %v255
        %v257 = vpop.xlane.xlu0 %256
        %v258 = vld [vmem:[%s245] sm:$0xff]
        %v259 = vld [vmem:[%s245 + $0x8] sm:$0xff]
        %v260 = vld [vmem:[%s245 + $0x10] sm:$0xff]
        %v261 = vld [vmem:[%s245 + $0x18] sm:$0xff]
        %v263 = vsel %vm254, %v252, 0
        %265 = vmatpush.msra.mxu0 0.0
        %266 = vmatpush.msra.mxu0 0.0
        %267 = vmatpush.msra.mxu0 0.0
        %268 = vmatpush.msra.mxu0 0.0
        %269 = vmatpush.msra.mxu0 0.0
        %270 = vmatpush.msra.mxu0 0.0
        %271 = vmatpush.msra.mxu0 0.0
        %272 = vmatpush.msra.mxu0 0.0
        %273 = vmatpush.msra.mxu0 0.0
        %274 = vmatpush.msra.mxu0 0.0
        %275 = vmatpush.msra.mxu0 0.0
        %276 = vmatpush.msra.mxu0 0.0
        %277 = vmatpush.msra.mxu0 %v261
        %278 = vmatpush.msra.mxu0 %v260
        %279 = vmatpush.msra.mxu0 %v259
        %280 = vmatpush.msra.mxu0 %v258
        %281 = vmatmul.f32.gmra.mxu0 %v263
        %v282 = vpop.f32.mrf.mxu0
        %v283 = vadd.f32 0.0, %v282
        %284 = vdwg.mxu0
        %v285 = vld [vmem:[%s248] sm:$0x1]
        %v287 = vperm.slane %v285, 0
        %v289 = vadd.f32 %v257, %v287
        %v290 = vadd.f32 %v289, %v283
        %v291 = vmul.f32 %v290, %v290
        %v292 = vld [vmem:[%s251] sm:$0x1]
        %v294 = vperm.slane %v292, 0
        %v296 = vmul.f32 %v291, %v294
        %v297 = vmul.f32 %v296, 1.442695
        %v298 = vpow.pop %v297
        %299 = vst [vmem:[%s237] sm:$0xff] %v298
        %s300 = sand.u32 %s144, 1
        %s301 = scalar_lea.sflag [#allocation3], %s300
        %s302 = sand.u32 %s144, 1
        %s303 = smul.addr %s302, 8
        %s304 = scalar_lea.vmem [#allocation2], %s303
        // Predicated region
        $region37: #{rbf_layer.1} parent=35 // pred_check
          %p305 = pneg %p154
        $region38: #{rbf_layer.1} parent=35 // pred_check_branch
          %307 = sbr.rel (%p305) target = $region40
        $region39: #{rbf_layer.1} parent=35 // pred_region
          %309 = vsyncadd %s301, 0
          %s310 = sadd.s32 %s23, %s22
          %s311 = smul.addr %s310, 8
          %s312 = scalar_lea.hbm %s4, %s311
          %s314 = sshll.u32 %s304, 4
          %s315 = int_to_ptr.vmem [resolvable:$true] %s314
          %s316 = sshll.u32 %s312, 4
          %s317 = int_to_ptr.hbm [resolvable:$true] %s316
          %319 = dma.vmem_to_hbm [thread:$0]  %s315, 128, %s317, %s301
        $region40: #{rbf_layer.1} parent=35 // pred_fallthru
          _
      $region36: #{rbf_layer.1} parent=5 // pred_fallthru
        _
      %p320 = scmp.le.s32.totalorder 2, %s13
      // Predicated region
      $region41: #{rbf_layer.1} parent=5 // pred_check
        %p321 = pneg %p320
      $region42: #{rbf_layer.1} parent=5 // pred_check_branch
        %323 = sbr.rel (%p321) target = $region44
      $region43: #{rbf_layer.1} parent=5 // pred_region
        %s324 = ssub.s32 %s13, 2
        // Predicated region
        $region45: #{rbf_layer.1} parent=43 // pred_check
          %p325 = pneg %p160
        $region46: #{rbf_layer.1} parent=43 // pred_check_branch
          %327 = sbr.rel (%p325) target = $region48
        $region47: #{rbf_layer.1} parent=43 // pred_region
          %s328 = sand.u32 %s145, 1
          %s329 = scalar_lea.sflag [#allocation3], %s328
          %s330 = sand.u32 %s145, 1
          %s331 = smul.addr %s330, 8
          %s332 = scalar_lea.vmem [#allocation2], %s331
          %334 = dma.done %s329, 128
        $region48: #{rbf_layer.1} parent=43 // pred_fallthru
          _
      $region44: #{rbf_layer.1} parent=5 // pred_fallthru
        _
    $region6: #{rbf_layer.1} parent=1 // loop_footer
      %s17 = sadd.s32 1, %s13
    $region7: #{rbf_layer.1} parent=1 // loop_footer_branch
      %12 = sbr.rel target = $region3
    $region8: #{rbf_layer.1} parent=1 // loop_exit
      _
    %335 = vsyncpa [#allocation3], 1
    %s336 = scalar_lea.sflag [#allocation3], 1
    %337 = vsyncpa %s336, 1

</llo_original>
